<compile_context>
chip_gen: v5e
topology: v5e:2x2
jax: 0.10.0
libtpu: 0.0.40
codegen_flags: <defaults>
</compile_context>

<pallas_src>
import functools

import jax
import jax.numpy as jnp
from jax import lax
from jax.experimental import pallas as pl
from jax.experimental.pallas import tpu as pltpu

LAPLACIAN = jnp.array([[-1., -1., -1.],
                       [-1.,  4., -1.],
                       [-1., -1., -1.]], dtype=jnp.float32)


# ----------------------------- small helpers ---------------------------------

def _round_up(x, m):
    return ((x + m - 1) // m) * m


def _vmem_limit_bytes():
    """~80% of physical VMEM, capped at 100 MiB (safe on v5e/v6e/v7x)."""
    cap = 64 << 20
    try:
        info = pltpu.get_tpu_info()
        cap = int(getattr(info, "vmem_capacity_bytes", cap)) or cap
    except Exception:
        pass
    return int(min(int(cap * 0.8), 100 << 20))


def _plan_rows(NC, HW, vmem_limit):
    """Pick block_rows (multiple of 8) and the padded NC extent."""
    # ~10 live f32 copies of a block (double-buffered ins/outs + temporaries).
    per_row = 10 * HW * 4
    budget_rows = max(8, ((int(vmem_limit // 2) // per_row) // 8) * 8)
    block_rows = min(512, budget_rows, _round_up(NC, 8))
    padded_nc = _round_up(NC, block_rows)
    return padded_nc, block_rows


def _pad_rows(x2d, padded_nc):
    nc = x2d.shape[0]
    if nc == padded_nc:
        return x2d
    return jnp.pad(x2d, ((0, padded_nc - nc), (0, 0)))   # zero rows: 0 SSE


def _tap_masks(H, W):
    """(4, H*W) f32 validity masks: [col j-1, col j+1, row i-1, row i+1]."""
    f32 = jnp.float32
    hh = jnp.arange(H)
    ww = jnp.arange(W)
    ones_h = jnp.ones((H,), f32)
    ones_w = jnp.ones((W,), f32)
    col_m1 = (ww >= 1).astype(f32)
    col_p1 = (ww <= W - 2).astype(f32)
    row_m1 = (hh >= 1).astype(f32)
    row_p1 = (hh <= H - 2).astype(f32)
    return jnp.stack([
        jnp.outer(ones_h, col_m1).reshape(H * W),
        jnp.outer(ones_h, col_p1).reshape(H * W),
        jnp.outer(row_m1, ones_w).reshape(H * W),
        jnp.outer(row_p1, ones_w).reshape(H * W),
    ])


def _weight_map(filter_weight, N, C):
    """(N*C, 9) f32: per-(n, c) sublane row of the 9 depthwise tap weights."""
    w = jnp.asarray(filter_weight, jnp.float32).reshape(C, 9)
    return jnp.tile(w, (N, 1))


# ----------------------------- in-kernel conv --------------------------------

def _conv_taps(x, wmap, masks, H, W):
    """Depthwise 3x3 cross-correlation (zero pad=1) in flat (rows, H*W) layout.

    Column-masked, column-rolled copies y_{oj} are built once and shared by
    the three row offsets; each row offset applies its row mask once to the
    weighted 3-tap partial sum (4 mask muls + 9 weight muls + 4 XLU rolls).
    """
    HW = H * W
    xf = x.astype(jnp.float32)
    y = {
        -1: masks[0:1, :] * pltpu.roll(xf, shift=1, axis=1),        # x[i, j-1]
         0: xf,                                                     # x[i, j]
         1: masks[1:2, :] * pltpu.roll(xf, shift=HW - 1, axis=1),   # x[i, j+1]
    }
    acc = None
    for oi in (-1, 0, 1):
        part = None
        for oj in (-1, 0, 1):
            t = 3 * (oi + 1) + (oj + 1)                 # row-major tap index
            term = wmap[:, t:t + 1] * y[oj]             # per-channel weight
            part = term if part is None else part + term
        if oi != 0:
            part = pltpu.roll(part, shift=(-oi * W) % HW, axis=1)   # row shift
            part = (masks[2:3, :] if oi == -1 else masks[3:4, :]) * part
        acc = part if acc is None else acc + part
    return acc


# ----------------------------- kernels ----------------------------------------

def _filter_kernel(H, W, x_ref, w_ref, m_ref, o_ref):
    o_ref[...] = _conv_taps(x_ref[...], w_ref[...], m_ref[...], H, W).astype(o_ref.dtype)


def _filter_sse_kernel(H, W, x_ref, t_ref, w_ref, m_ref, o_ref, sse_ref):
    acc = _conv_taps(x_ref[...], w_ref[...], m_ref[...], H, W)
    o_ref[...] = acc.astype(o_ref.dtype)
    diff = acc - t_ref[...].astype(jnp.float32)
    # Per-block partial SSE, written to this block's own lane-dense slab
    # (parallel-safe: no shared accumulator).
    sse_ref[...] = jnp.full((8, 128), jnp.sum(diff * diff), jnp.float32)


def _sse_only_kernel(H, W, x_ref, t_ref, w_ref, m_ref, sse_ref):
    acc = _conv_taps(x_ref[...], w_ref[...], m_ref[...], H, W)
    diff = acc - t_ref[...].astype(jnp.float32)
    sse_ref[...] = jnp.full((8, 128), jnp.sum(diff * diff), jnp.float32)


# ----------------------------- pallas_call builders ---------------------------

def _mosaic_params(vmem_limit):
    return pltpu.CompilerParams(dimension_semantics=("parallel",),
                                vmem_limit_bytes=int(vmem_limit))


@functools.lru_cache(maxsize=None)
def _build_filter_call(padded_nc, block_rows, H, W, out_dtype_name, vmem_limit):
    HW = H * W
    nb = padded_nc // block_rows
    out_dtype = jnp.dtype(out_dtype_name)
    flops = padded_nc * HW * 21
    bytes_accessed = int(padded_nc * HW * (4 + out_dtype.itemsize)
                         + 4 * (padded_nc * 9 + 4 * HW))
    return pl.pallas_call(
        functools.partial(_filter_kernel, H, W),
        out_shape=jax.ShapeDtypeStruct((padded_nc, HW), out_dtype),
        grid=(nb,),
        in_specs=[
            pl.BlockSpec((block_rows, HW), lambda i: (i, 0)),   # image rows
            pl.BlockSpec((block_rows, 9), lambda i: (i, 0)),    # per-channel taps
            pl.BlockSpec((4, HW), lambda i: (0, 0)),            # border masks (resident)
        ],
        out_specs=pl.BlockSpec((block_rows, HW), lambda i: (i, 0)),
        compiler_params=_mosaic_params(vmem_limit),
        cost_estimate=pl.CostEstimate(flops=int(flops), transcendentals=0,
                                      bytes_accessed=bytes_accessed),
    )


@functools.lru_cache(maxsize=None)
def _build_loss_call(padded_nc, block_rows, H, W, tgt_dtype_name, out_dtype_name,
                     keep_filter, vmem_limit):
    HW = H * W
    nb = padded_nc // block_rows
    t_size = jnp.dtype(tgt_dtype_name).itemsize
    o_size = jnp.dtype(out_dtype_name).itemsize
    flops = padded_nc * HW * 24
    bytes_accessed = int(padded_nc * HW * (4 + t_size + (o_size if keep_filter else 0))
                         + 4 * (padded_nc * 9 + 4 * HW + nb * 8 * 128))

    in_specs = [
        pl.BlockSpec((block_rows, HW), lambda i: (i, 0)),   # syn image rows
        pl.BlockSpec((block_rows, HW), lambda i: (i, 0)),   # target-filter rows
        pl.BlockSpec((block_rows, 9), lambda i: (i, 0)),    # per-channel taps
        pl.BlockSpec((4, HW), lambda i: (0, 0)),            # border masks (resident)
    ]
    sse_shape = jax.ShapeDtypeStruct((8, nb * 128), jnp.float32)
    sse_spec = pl.BlockSpec((8, 128), lambda i: (0, i))
    if keep_filter:
        kernel = functools.partial(_filter_sse_kernel, H, W)
        out_shape = (jax.ShapeDtypeStruct((padded_nc, HW), jnp.dtype(out_dtype_name)),
                     sse_shape)
        out_specs = (pl.BlockSpec((block_rows, HW), lambda i: (i, 0)), sse_spec)
    else:
        kernel = functools.partial(_sse_only_kernel, H, W)
        out_shape = sse_shape
        out_specs = sse_spec

    return pl.pallas_call(
        kernel,
        out_shape=out_shape,
        grid=(nb,),
        in_specs=in_specs,
        out_specs=out_specs,
        compiler_params=_mosaic_params(vmem_limit),
        cost_estimate=pl.CostEstimate(flops=int(flops), transcendentals=0,
                                      bytes_accessed=bytes_accessed),
    )


# ----------------------------- wrapper module ----------------------------------

def _avg_pool2d(x):
    # F.avg_pool2d(kernel_size=2, stride=2) as wrapper glue (avg=False in tests).
    N, C, H, W = x.shape
    return x.reshape(N, C, H // 2, 2, W // 2, 2).mean(axis=(3, 5))


class TVLoss:
    """JAX/Pallas port of the PyTorch TVLoss module (forward semantics)."""

    def __init__(self, image_target, filter_weight, avg=False,
                 keep_syn_filter=True, target_store_dtype=jnp.float32):
        self.avg = avg
        self.weight = filter_weight                              # (3, 1, 3, 3)
        k = filter_weight.shape[2]
        self.pad = (k - 1) // 2
        self.keep_syn_filter = keep_syn_filter
        self._tgt_dtype = jnp.dtype(target_store_dtype)
        self._vmem_limit = _vmem_limit_bytes()
        self._setup(image_target)
        self.syn_filter = None
        self.loss = None

    def _setup(self, image_target):
        self.target = _avg_pool2d(image_target) if self.avg else image_target
        N, C, H, W = self.target.shape
        self._shape = (N, C, H, W)
        self._padded_nc, self._block_rows = _plan_rows(N * C, H * W, self._vmem_limit)
        self._wmap = _pad_rows(_weight_map(self.weight, N, C), self._padded_nc)
        self._masks = _tap_masks(H, W)
        tflat = _pad_rows(self.target.reshape(N * C, H * W), self._padded_nc)
        call = _build_filter_call(self._padded_nc, self._block_rows, H, W,
                                  self._tgt_dtype.name, self._vmem_limit)
        tf_flat = call(tflat, self._wmap, self._masks)
        self._target_filter_flat = tf_flat                       # padded, stored dtype
        self.target_filter = (tf_flat[:N * C].astype(self.target.dtype)
                              .reshape(N, C, H, W))

    def forward(self, syn_image):
        syn = _avg_pool2d(syn_image) if self.avg else syn_image
        N, C, H, W = self._shape
        xflat = _pad_rows(syn.reshape(N * C, H * W), self._padded_nc)
        call = _build_loss_call(self._padded_nc, self._block_rows, H, W,
                                self._tgt_dtype.name,
                                jnp.dtype(syn.dtype).name,
                                self.keep_syn_filter, self._vmem_limit)
        if self.keep_syn_filter:
            filt, partials = call(xflat, self._target_filter_flat,
                                  self._wmap, self._masks)
            self.syn_filter = filt[:N * C].reshape(N, C, H, W)
        else:
            partials = call(xflat, self._target_filter_flat,
                            self._wmap, self._masks)
            self.syn_filter = None
        nb = partials.shape[1] // 128
        sse = jnp.sum(partials.reshape(8, nb, 128)[0, :, 0])
        self.loss = sse / (N * C * H * W)                        # mse_loss (mean)
        return syn_image                                         # input unchanged

    def update(self, image_target):
        self._setup(image_target)


# ----------------------------- main --------------------------------------------

if __name__ == "__main__":
    key = jax.random.PRNGKey(0)
    k1, k2 = jax.random.split(key)
    N, C, H, W = 2, 3, 16, 16                    # groups=3 conv => 3 channels
    target = jax.random.normal(k1, (N, C, H, W), dtype=jnp.float32)
    syn = jax.random.normal(k2, (N, C, H, W), dtype=jnp.float32)

    # Deterministic parameter init: Laplacian replicated per channel,
    # shape (out=3, in/groups=1, 3, 3) as the module expects.
    filter_weight = jnp.tile(LAPLACIAN[None, None], (3, 1, 1, 1)).astype(jnp.float32)

    mod = TVLoss(target, filter_weight, avg=False)
    out = jax.block_until_ready(mod.forward(syn))
    loss = jax.block_until_ready(mod.loss)

    # Pure-JAX reference (lax depthwise conv) for correctness.
    def ref_filter(x, w):
        return lax.conv_general_dilated(
            x, w, (1, 1), ((1, 1), (1, 1)),
            dimension_numbers=("NCHW", "OIHW", "NCHW"),
            feature_group_count=3)

    tf_ref = ref_filter(target, filter_weight)
    sf_ref = ref_filter(syn, filter_weight)
    loss_ref = jnp.mean((sf_ref - tf_ref) ** 2)

    assert jnp.allclose(mod.target_filter, tf_ref, atol=1e-4), "target filter mismatch"
    assert jnp.allclose(mod.syn_filter, sf_ref, atol=1e-4), "syn filter mismatch"
    assert jnp.allclose(loss, loss_ref, atol=1e-4, rtol=1e-4), "loss mismatch"
    assert jnp.allclose(out, syn), "forward must return syn_image unchanged"

    # Loss-only fast path (drops the syn_filter HBM write).
    mod_fast = TVLoss(target, filter_weight, avg=False, keep_syn_filter=False)
    mod_fast.forward(syn)
    loss_fast = jax.block_until_ready(mod_fast.loss)
    assert mod_fast.syn_filter is None
    assert jnp.allclose(loss_fast, loss_ref, atol=1e-4, rtol=1e-4), "loss-only mismatch"

    # bf16 target_filter storage (byte-reduction option for mem-bound v5e/v6e).
    mod_bf16 = TVLoss(target, filter_weight, avg=False, keep_syn_filter=False,
                      target_store_dtype=jnp.bfloat16)
    mod_bf16.forward(syn)
    loss_bf16 = jax.block_until_ready(mod_bf16.loss)
    assert jnp.allclose(loss_bf16, loss_ref, rtol=0.1), "bf16 loss drifted"

    print("KERNEL_OK")
</pallas_src>

<mosaic_0001>
module attributes {stable_mosaic.version = 11 : i64} {
  func.func @_filter_kernel(%arg0: i32, %arg1: memref<8x256xf32, #tpu.memory_space<vmem>>, %arg2: memref<8x9xf32, #tpu.memory_space<vmem>>, %arg3: memref<4x256xf32, #tpu.memory_space<vmem>>, %arg4: memref<8x256xf32, #tpu.memory_space<vmem>>) attributes {dimension_semantics = [#tpu.dimension_semantics<parallel>], iteration_bounds = array<i64: 1>, scalar_prefetch = 0 : i64, scratch_operands = 0 : i64, tpu.core_type = #tpu.core_type<tc>, window_params = [{transform_indices = @transform_0, window_bounds = array<i64: 8, 256>}, {transform_indices = @transform_1, window_bounds = array<i64: 8, 9>}, {pipeline_mode = #tpu.pipeline_mode<synchronous>, transform_indices = @transform_2, window_bounds = array<i64: 4, 256>}, {transform_indices = @transform_3, window_bounds = array<i64: 8, 256>}]} {
    %c0 = arith.constant 0 : index
    %c0_0 = arith.constant 0 : index
    %0 = vector.load %arg1[%c0, %c0_0] : memref<8x256xf32, #tpu.memory_space<vmem>>, vector<8x256xf32>
    %c0_1 = arith.constant 0 : index
    %c0_2 = arith.constant 0 : index
    %1 = vector.load %arg2[%c0_1, %c0_2] : memref<8x9xf32, #tpu.memory_space<vmem>>, vector<8x9xf32>
    %c0_3 = arith.constant 0 : index
    %c0_4 = arith.constant 0 : index
    %2 = vector.load %arg3[%c0_3, %c0_4] : memref<4x256xf32, #tpu.memory_space<vmem>>, vector<4x256xf32>
    %3 = vector.extract_strided_slice %2 {offsets = [0, 0], sizes = [1, 256], strides = [1, 1]} : vector<4x256xf32> to vector<1x256xf32>
    %c1_i32 = arith.constant 1 : i32
    %4 = tpu.dynamic_rotate %0 by %c1_i32 dim 1 : vector<8x256xf32>, i32 -> vector<8x256xf32>
    %5 = vector.broadcast %3 : vector<1x256xf32> to vector<8x256xf32>
    %6 = arith.mulf %5, %4 : vector<8x256xf32>
    %7 = vector.extract_strided_slice %2 {offsets = [1, 0], sizes = [1, 256], strides = [1, 1]} : vector<4x256xf32> to vector<1x256xf32>
    %c255_i32 = arith.constant 255 : i32
    %8 = tpu.dynamic_rotate %0 by %c255_i32 dim 1 : vector<8x256xf32>, i32 -> vector<8x256xf32>
    %9 = vector.broadcast %7 : vector<1x256xf32> to vector<8x256xf32>
    %10 = arith.mulf %9, %8 : vector<8x256xf32>
    %11 = vector.extract_strided_slice %1 {offsets = [0, 0], sizes = [8, 1], strides = [1, 1]} : vector<8x9xf32> to vector<8x1xf32>
    %12 = vector.broadcast %11 : vector<8x1xf32> to vector<8x256xf32>
    %13 = arith.mulf %12, %6 : vector<8x256xf32>
    %14 = vector.extract_strided_slice %1 {offsets = [0, 1], sizes = [8, 1], strides = [1, 1]} : vector<8x9xf32> to vector<8x1xf32>
    %15 = vector.broadcast %14 : vector<8x1xf32> to vector<8x256xf32>
    %16 = arith.mulf %15, %0 : vector<8x256xf32>
    %17 = arith.addf %13, %16 : vector<8x256xf32>
    %18 = vector.extract_strided_slice %1 {offsets = [0, 2], sizes = [8, 1], strides = [1, 1]} : vector<8x9xf32> to vector<8x1xf32>
    %19 = vector.broadcast %18 : vector<8x1xf32> to vector<8x256xf32>
    %20 = arith.mulf %19, %10 : vector<8x256xf32>
    %21 = arith.addf %17, %20 : vector<8x256xf32>
    %c16_i32 = arith.constant 16 : i32
    %22 = tpu.dynamic_rotate %21 by %c16_i32 dim 1 : vector<8x256xf32>, i32 -> vector<8x256xf32>
    %23 = vector.extract_strided_slice %2 {offsets = [2, 0], sizes = [1, 256], strides = [1, 1]} : vector<4x256xf32> to vector<1x256xf32>
    %24 = vector.broadcast %23 : vector<1x256xf32> to vector<8x256xf32>
    %25 = arith.mulf %24, %22 : vector<8x256xf32>
    %26 = vector.extract_strided_slice %1 {offsets = [0, 3], sizes = [8, 1], strides = [1, 1]} : vector<8x9xf32> to vector<8x1xf32>
    %27 = vector.broadcast %26 : vector<8x1xf32> to vector<8x256xf32>
    %28 = arith.mulf %27, %6 : vector<8x256xf32>
    %29 = vector.extract_strided_slice %1 {offsets = [0, 4], sizes = [8, 1], strides = [1, 1]} : vector<8x9xf32> to vector<8x1xf32>
    %30 = vector.broadcast %29 : vector<8x1xf32> to vector<8x256xf32>
    %31 = arith.mulf %30, %0 : vector<8x256xf32>
    %32 = arith.addf %28, %31 : vector<8x256xf32>
    %33 = vector.extract_strided_slice %1 {offsets = [0, 5], sizes = [8, 1], strides = [1, 1]} : vector<8x9xf32> to vector<8x1xf32>
    %34 = vector.broadcast %33 : vector<8x1xf32> to vector<8x256xf32>
    %35 = arith.mulf %34, %10 : vector<8x256xf32>
    %36 = arith.addf %32, %35 : vector<8x256xf32>
    %37 = arith.addf %25, %36 : vector<8x256xf32>
    %38 = vector.extract_strided_slice %1 {offsets = [0, 6], sizes = [8, 1], strides = [1, 1]} : vector<8x9xf32> to vector<8x1xf32>
    %39 = vector.broadcast %38 : vector<8x1xf32> to vector<8x256xf32>
    %40 = arith.mulf %39, %6 : vector<8x256xf32>
    %41 = vector.extract_strided_slice %1 {offsets = [0, 7], sizes = [8, 1], strides = [1, 1]} : vector<8x9xf32> to vector<8x1xf32>
    %42 = vector.broadcast %41 : vector<8x1xf32> to vector<8x256xf32>
    %43 = arith.mulf %42, %0 : vector<8x256xf32>
    %44 = arith.addf %40, %43 : vector<8x256xf32>
    %45 = vector.extract_strided_slice %1 {offsets = [0, 8], sizes = [8, 1], strides = [1, 1]} : vector<8x9xf32> to vector<8x1xf32>
    %46 = vector.broadcast %45 : vector<8x1xf32> to vector<8x256xf32>
    %47 = arith.mulf %46, %10 : vector<8x256xf32>
    %48 = arith.addf %44, %47 : vector<8x256xf32>
    %c240_i32 = arith.constant 240 : i32
    %49 = tpu.dynamic_rotate %48 by %c240_i32 dim 1 : vector<8x256xf32>, i32 -> vector<8x256xf32>
    %50 = vector.extract_strided_slice %2 {offsets = [3, 0], sizes = [1, 256], strides = [1, 1]} : vector<4x256xf32> to vector<1x256xf32>
    %51 = vector.broadcast %50 : vector<1x256xf32> to vector<8x256xf32>
    %52 = arith.mulf %51, %49 : vector<8x256xf32>
    %53 = arith.addf %37, %52 : vector<8x256xf32>
    %c0_5 = arith.constant 0 : index
    %c0_6 = arith.constant 0 : index
    %54 = vector.load %arg4[%c0_5, %c0_6] : memref<8x256xf32, #tpu.memory_space<vmem>>, vector<8x256xf32>
    tpu.vector_store %arg4[%c0_5, %c0_6], %53 {strides = array<i32>} : memref<8x256xf32, #tpu.memory_space<vmem>>, vector<8x256xf32>,
    return
  }
  func.func @transform_0(%arg0: i32) -> (i32, i32) {
    %c0_i32 = arith.constant 0 : i32
    %c0_i32_0 = arith.constant 0 : i32
    return %arg0, %c0_i32 : i32, i32
  }
  func.func @transform_1(%arg0: i32) -> (i32, i32) {
    %c0_i32 = arith.constant 0 : i32
    %c0_i32_0 = arith.constant 0 : i32
    return %arg0, %c0_i32 : i32, i32
  }
  func.func @transform_2(%arg0: i32) -> (i32, i32) {
    %c0_i32 = arith.constant 0 : i32
    %c0_i32_0 = arith.constant 0 : i32
    %c0_i32_1 = arith.constant 0 : i32
    return %c0_i32, %c0_i32_0 : i32, i32
  }
  func.func @transform_3(%arg0: i32) -> (i32, i32) {
    %c0_i32 = arith.constant 0 : i32
    %c0_i32_0 = arith.constant 0 : i32
    return %arg0, %c0_i32 : i32, i32
  }
}

</mosaic_0001>

<llo_original>
// kernel: tpu_custom_call.1
$region0: #{tpu_custom_call.1}
  #allocation0 [shape = 'u32[]', space=smem, size = 0x4, offset = 0x4, fixed_abs, tag = 'smem constant byte address 0x4 - core index']
  #allocation1 [shape = 'u32[72,128]{1,0:T(1,128)}', space=vmem, size = 0x9000, scoped, tag = 'internal scratch']
  %s0 = inlined_call_operand.hbm [shape: f32[8,256], index: 0, kind: input, shape index: {}]
  %s1 = inlined_call_operand.hbm [shape: f32[8,9], index: 1, kind: input, shape index: {}]
  %s2 = inlined_call_operand.hbm [shape: f32[4,256], index: 2, kind: input, shape index: {}]
  %s3 = inlined_call_operand.hbm [shape: f32[8,256], index: 3, kind: output, shape index: {}]
  %s4 = sld [smem:[#allocation0]]
  $region34: #{tpu_custom_call.1} parent=0
    _
  %s6 = ssub.s32 1, %s4
  %s7 = scalar_select 0, %s6, %s4
  $region1: #{tpu_custom_call.1} parent=0
    #allocation2 [shape = 'u8[8192]{0}', space=vmem, size = 0x2000, scoped, tag = 'input window, operand 0, single buffered']
    #allocation3 [shape = 's32[1]{0}', space=sflag, size = 0x4, scoped, tag = 'scoped memory for tpu_custom_call.1']
    #allocation4 [shape = 's32[1]{0}', space=sflag, size = 0x4, scoped, tag = 'scoped memory for tpu_custom_call.1']
    #allocation5 [shape = 'u8[4096]{0}', space=vmem, size = 0x1000, scoped, tag = 'input window, operand 1, single buffered']
    #allocation6 [shape = 's32[1]{0}', space=sflag, size = 0x4, scoped, tag = 'scoped memory for tpu_custom_call.1']
    #allocation7 [shape = 'u8[4096]{0}', space=vmem, size = 0x1000, scoped, tag = 'input window, operand 2, single buffered']
    #allocation8 [shape = 'u8[8192]{0}', space=vmem, size = 0x2000, scoped, tag = 'output window, operand 0, single buffered']
    %8 = vsyncpa [#allocation3], 0
    %9 = vsyncpa [#allocation6], 0
    %10 = vsyncpa [#allocation4], 0
    // Predicated region
    $region2: #{tpu_custom_call.1} parent=1 // pred_check
      _
    $region3: #{tpu_custom_call.1} parent=1 // pred_check_branch
      %12 = sbr.rel (0) target = $region5
    $region4: #{tpu_custom_call.1} parent=1 // pred_region
      %14 = vsyncadd [#allocation3], 0
      %s16 = sshll.u32 %s0, 4
      %s17 = int_to_ptr.hbm [resolvable:$true] %s16
      %s18 = sshll.u32 [#allocation2], 4
      %s19 = int_to_ptr.vmem [resolvable:$true] %s18
      %21 = dma.hbm_to_vmem [thread:$0]  %s17, 256, %s19, [#allocation3]
    $region5: #{tpu_custom_call.1} parent=1 // pred_fallthru
      _
    // Predicated region
    $region6: #{tpu_custom_call.1} parent=1 // pred_check
      _
    $region7: #{tpu_custom_call.1} parent=1 // pred_check_branch
      %23 = sbr.rel (0) target = $region9
    $region8: #{tpu_custom_call.1} parent=1 // pred_region
      %25 = vsyncadd [#allocation6], 0
      %s27 = sshll.u32 %s1, 4
      %s28 = int_to_ptr.hbm [resolvable:$true] %s27
      %s29 = sshll.u32 [#allocation5], 4
      %s30 = int_to_ptr.vmem [resolvable:$true] %s29
      %32 = dma.hbm_to_vmem [thread:$0]  %s28, 128, %s30, [#allocation6]
    $region9: #{tpu_custom_call.1} parent=1 // pred_fallthru
      _
    // Predicated region
    $region10: #{tpu_custom_call.1} parent=1 // pred_check
      _
    $region11: #{tpu_custom_call.1} parent=1 // pred_check_branch
      %34 = sbr.rel (0) target = $region13
    $region12: #{tpu_custom_call.1} parent=1 // pred_region
      %36 = vsyncadd [#allocation6], 0
      %s38 = sshll.u32 %s2, 4
      %s39 = int_to_ptr.hbm [resolvable:$true] %s38
      %s40 = sshll.u32 [#allocation7], 4
      %s41 = int_to_ptr.vmem [resolvable:$true] %s40
      %43 = dma.hbm_to_vmem [thread:$0]  %s39, 128, %s41, [#allocation6]
    $region13: #{tpu_custom_call.1} parent=1 // pred_fallthru
      _
    // Predicated region
    $region14: #{tpu_custom_call.1} parent=1 // pred_check
      _
    $region15: #{tpu_custom_call.1} parent=1 // pred_check_branch
      %45 = sbr.rel (0) target = $region17
    $region16: #{tpu_custom_call.1} parent=1 // pred_region
      %47 = dma.done [#allocation3], 256
    $region17: #{tpu_custom_call.1} parent=1 // pred_fallthru
      _
    // Predicated region
    $region18: #{tpu_custom_call.1} parent=1 // pred_check
      _
    $region19: #{tpu_custom_call.1} parent=1 // pred_check_branch
      %49 = sbr.rel (0) target = $region21
    $region20: #{tpu_custom_call.1} parent=1 // pred_region
      %51 = dma.done [#allocation6], 128
    $region21: #{tpu_custom_call.1} parent=1 // pred_fallthru
      _
    // Predicated region
    $region22: #{tpu_custom_call.1} parent=1 // pred_check
      _
    $region23: #{tpu_custom_call.1} parent=1 // pred_check_branch
      %53 = sbr.rel (0) target = $region25
    $region24: #{tpu_custom_call.1} parent=1 // pred_region
      %55 = dma.done [#allocation6], 128
    $region25: #{tpu_custom_call.1} parent=1 // pred_fallthru
      _
    %v56 = vld [vmem:[#allocation2] sm:$0xff]
    %v57 = vld [vmem:[#allocation2 + $0x8] sm:$0xff]
    %v58 = vld [vmem:[#allocation5] sm:$0xff]
    %v59 = vld [vmem:[#allocation7] sm:$0xff]
    %60 = vrot.lane.b32.xlu0 %v56, 1
    %v61 = vpop.permute.xlu0 %60
    %62 = vrot.lane.b32.xlu0 %v57, 1
    %v63 = vpop.permute.xlu0 %62
    %v64 = vlaneseq
    %v65 = vand.u32 %v64, 127
    %vm66 = vcmp.lt.s32.totalorder %v65, 1
    %v67 = vsel %vm66, %v61, %v63
    %v68 = vsel %vm66, %v63, %v61
    %v70 = vperm.slane %v59, 0
    %v71 = vperm.slane %v59, 4
    %v74 = vperm.slane %v70, 0
    %v75 = vperm.slane %v71, 0
    %v76 = vmul.f32 %v74, %v68
    %v77 = vmul.f32 %v75, %v67
    %78 = vrot.lane.b32.xlu0 %v56, 127
    %v79 = vpop.permute.xlu0 %78
    %80 = vrot.lane.b32.xlu0 %v57, 127
    %v81 = vpop.permute.xlu0 %80
    %vm82 = vcmp.lt.s32.totalorder %v65, 127
    %v83 = vsel %vm82, %v79, %v81
    %v84 = vsel %vm82, %v81, %v79
    %v85 = vperm.slane %v59, 1
    %v86 = vperm.slane %v59, 5
    %v89 = vperm.slane %v85, 1
    %v90 = vperm.slane %v86, 1
    %v91 = vmul.f32 %v89, %v83
    %v92 = vmul.f32 %v90, %v84
    %94 = vset.pattern.permute.xlu0 0
    %95 = vperm.xlu0 %94, %v58
    %v96 = vpop.permute.xlu0 %95
    %v98 = vmul.f32 %v96, %v76
    %v99 = vmul.f32 %v96, %v77
    %100 = vset.pattern.permute.xlu0 1
    %101 = vperm.xlu0 %100, %v58
    %v102 = vpop.permute.xlu0 %101
    %v104 = vmul.f32 %v102, %v56
    %v105 = vmul.f32 %v102, %v57
    %v106 = vadd.f32 %v98, %v104
    %v107 = vadd.f32 %v99, %v105
    %108 = vset.pattern.permute.xlu0 2
    %109 = vperm.xlu0 %108, %v58
    %v110 = vpop.permute.xlu0 %109
    %v112 = vmul.f32 %v110, %v91
    %v113 = vmul.f32 %v110, %v92
    %v114 = vadd.f32 %v106, %v112
    %v115 = vadd.f32 %v107, %v113
    %116 = vrot.lane.b32.xlu0 %v114, 16
    %v117 = vpop.permute.xlu0 %116
    %118 = vrot.lane.b32.xlu0 %v115, 16
    %v119 = vpop.permute.xlu0 %118
    %vm120 = vcmp.lt.s32.totalorder %v65, 16
    %v121 = vsel %vm120, %v117, %v119
    %v122 = vsel %vm120, %v119, %v117
    %v123 = vperm.slane %v59, 2
    %v124 = vperm.slane %v59, 6
    %v127 = vperm.slane %v123, 2
    %v128 = vperm.slane %v124, 2
    %v129 = vmul.f32 %v127, %v122
    %v130 = vmul.f32 %v128, %v121
    %131 = vset.pattern.permute.xlu0 3
    %132 = vperm.xlu0 %131, %v58
    %v133 = vpop.permute.xlu0 %132
    %v135 = vmul.f32 %v133, %v76
    %v136 = vmul.f32 %v133, %v77
    %137 = vset.pattern.permute.xlu0 4
    %138 = vperm.xlu0 %137, %v58
    %v139 = vpop.permute.xlu0 %138
    %v141 = vmul.f32 %v139, %v56
    %v142 = vmul.f32 %v139, %v57
    %v143 = vadd.f32 %v135, %v141
    %v144 = vadd.f32 %v136, %v142
    %145 = vset.pattern.permute.xlu0 5
    %146 = vperm.xlu0 %145, %v58
    %v147 = vpop.permute.xlu0 %146
    %v149 = vmul.f32 %v147, %v91
    %v150 = vmul.f32 %v147, %v92
    %v151 = vadd.f32 %v143, %v149
    %v152 = vadd.f32 %v144, %v150
    %v153 = vadd.f32 %v129, %v151
    %v154 = vadd.f32 %v130, %v152
    %155 = vset.pattern.permute.xlu0 6
    %156 = vperm.xlu0 %155, %v58
    %v157 = vpop.permute.xlu0 %156
    %v159 = vmul.f32 %v157, %v76
    %v160 = vmul.f32 %v157, %v77
    %161 = vset.pattern.permute.xlu0 7
    %162 = vperm.xlu0 %161, %v58
    %v163 = vpop.permute.xlu0 %162
    %v165 = vmul.f32 %v163, %v56
    %v166 = vmul.f32 %v163, %v57
    %v167 = vadd.f32 %v159, %v165
    %v168 = vadd.f32 %v160, %v166
    %169 = vset.pattern.permute.xlu0 8
    %170 = vperm.xlu0 %169, %v58
    %v171 = vpop.permute.xlu0 %170
    %v173 = vmul.f32 %v171, %v91
    %v174 = vmul.f32 %v171, %v92
    %v175 = vadd.f32 %v167, %v173
    %v176 = vadd.f32 %v168, %v174
    %177 = vrot.lane.b32.xlu0 %v175, 112
    %v178 = vpop.permute.xlu0 %177
    %179 = vrot.lane.b32.xlu0 %v176, 112
    %v180 = vpop.permute.xlu0 %179
    %vm181 = vcmp.lt.s32.totalorder %v65, 112
    %v182 = vsel %vm181, %v178, %v180
    %v183 = vsel %vm181, %v180, %v178
    %v184 = vperm.slane %v59, 3
    %v185 = vperm.slane %v59, 7
    %v188 = vperm.slane %v184, 3
    %v189 = vperm.slane %v185, 3
    %v190 = vmul.f32 %v188, %v182
    %v191 = vmul.f32 %v189, %v183
    %v192 = vadd.f32 %v153, %v190
    %v193 = vadd.f32 %v154, %v191
    %194 = vst [vmem:[#allocation8] sm:$0xff] %v192
    %195 = vst [vmem:[#allocation8 + $0x8] sm:$0xff] %v193
    // Predicated region
    $region26: #{tpu_custom_call.1} parent=1 // pred_check
      _
    $region27: #{tpu_custom_call.1} parent=1 // pred_check_branch
      %197 = sbr.rel (0) target = $region29
    $region28: #{tpu_custom_call.1} parent=1 // pred_region
      %199 = vsyncadd [#allocation4], 0
      %s201 = sshll.u32 [#allocation8], 4
      %s202 = int_to_ptr.vmem [resolvable:$true] %s201
      %s203 = sshll.u32 %s3, 4
      %s204 = int_to_ptr.hbm [resolvable:$true] %s203
      %206 = dma.vmem_to_hbm [thread:$0]  %s202, 256, %s204, [#allocation4]
    $region29: #{tpu_custom_call.1} parent=1 // pred_fallthru
      _
    // Predicated region
    $region30: #{tpu_custom_call.1} parent=1 // pred_check
      _
    $region31: #{tpu_custom_call.1} parent=1 // pred_check_branch
      %208 = sbr.rel (0) target = $region33
    $region32: #{tpu_custom_call.1} parent=1 // pred_region
      %210 = dma.done [#allocation4], 256
    $region33: #{tpu_custom_call.1} parent=1 // pred_fallthru
      _
    %211 = vsyncpa [#allocation3], 1
    %212 = vsyncpa [#allocation6], 1
    %213 = vsyncpa [#allocation4], 1

</llo_original>
